<compile_context>
chip_gen: v5e
topology: v5e:2x2
jax: 0.10.0
libtpu: 0.0.40
codegen_flags: <defaults>
</compile_context>

<pallas_src>
import functools

import jax
import jax.numpy as jnp
from jax.experimental import pallas as pl
from jax.experimental.pallas import tpu as pltpu


def _layernorm_body(x_ref, o_ref, g_ref, b_ref, *, eps, n_feat, n_feat_pad):
    # x_ref: (rows, F_pad) block; each row is one flattened sample (C*H*W),
    # zero-padded in the lane dim up to F_pad.
    x = x_ref[...].astype(jnp.float32)

    # Pass 1: mean.  Padded columns are zero, so the sum is unaffected; divide
    # by the true feature count.
    s = jnp.sum(x, axis=-1, keepdims=True)            # (rows, 1)
    mean = s * (1.0 / n_feat)

    # Pass 2: centered sum of squares (numerically safer than sum(x^2)-n*m^2).
    xc = x - mean
    if n_feat_pad > n_feat:
        # Padded columns become -mean after centering; mask them out of the
        # variance reduction.  Static branch: no cost when there is no padding.
        col = jax.lax.broadcasted_iota(jnp.int32, x.shape, dimension=x.ndim - 1)
        xc_sq_src = jnp.where(col < n_feat, xc, 0.0)
    else:
        xc_sq_src = xc
    # Unbiased variance (torch.std default): sum((x-mean)^2) / (n - 1)
    var = jnp.sum(xc_sq_src * xc_sq_src, axis=-1, keepdims=True) * (1.0 / (n_feat - 1))
    std = jnp.sqrt(var)

    # Exact reciprocal: the operand is only (rows, 1), so this costs nothing
    # and keeps bit-level parity with an exact divide.
    inv = pl.reciprocal(std + eps, approx=False)      # (rows, 1)

    y = xc * inv
    if g_ref is not None:
        y = y * g_ref[...].astype(jnp.float32) + b_ref[...].astype(jnp.float32)
    o_ref[...] = y.astype(o_ref.dtype)


def _kernel_affine(x_ref, g_ref, b_ref, o_ref, *, eps, n_feat, n_feat_pad):
    _layernorm_body(x_ref, o_ref, g_ref, b_ref, eps=eps, n_feat=n_feat,
                    n_feat_pad=n_feat_pad)


def _kernel_plain(x_ref, o_ref, *, eps, n_feat, n_feat_pad):
    _layernorm_body(x_ref, o_ref, None, None, eps=eps, n_feat=n_feat,
                    n_feat_pad=n_feat_pad)


def _vmem_budget_bytes():
    """Generation-aware VMEM request: capacity minus headroom, capped."""
    cap = 64 * 1024 * 1024  # conservative fallback (v7x per-core physical VMEM)
    try:
        cap = int(pltpu.get_tpu_info().vmem_capacity_bytes)
    except Exception:  # pragma: no cover - info query unavailable
        pass
    headroom = 16 * 1024 * 1024        # Mosaic internal scratch, misc buffers
    budget = cap - headroom
    budget = min(budget, 100 * 1024 * 1024)   # don't over-request on 128 MiB parts
    budget = max(budget, 32 * 1024 * 1024)
    return budget


def _select_rows(N, F_pad, itemsize, budget_bytes, affine):
    """Largest multiple-of-8 row-block that fits the VMEM budget."""
    # Per-row bytes: double-buffered input + output blocks, plus ~3 f32
    # temporaries (upcast / centered / product) inside the kernel.
    per_row = F_pad * (4 * itemsize + 3 * 4)
    # Resident gamma/beta rows (f32, double-buffered by the pipeline).
    fixed = (2 * 2 * 4 * F_pad) if affine else 0
    usable = int(budget_bytes * 0.7) - fixed
    if usable < 8 * per_row:
        # TODO(synk): for samples whose row doesn't fit even an 8-row block
        # (huge C*H*W), add a second 'arbitrary' grid axis over the feature dim
        # with (rows,1) sum/sumsq VMEM accumulators + a normalize pass.
        raise NotImplementedError("feature dim too large for single-pass kernel")
    rows = (usable // per_row // 8) * 8
    rows = max(8, min(rows, 512))

    n_pad8 = pl.cdiv(N, 8) * 8
    rows = min(rows, n_pad8)
    # Keep >= 2 grid steps when possible: enables software pipelining and
    # keeps both TensorCores busy on v7x via dimension_semantics=('parallel',).
    if n_pad8 >= 16 and n_pad8 // rows < 2:
        rows = max(8, ((n_pad8 // 2) // 8) * 8)
    return rows


def layer_norm(x, gamma=None, beta=None, eps=1e-5, affine=True):
    """Pallas implementation of the PyTorch LayerNorm module (torch.std
    semantics: unbiased variance, eps added outside the sqrt).

    NOTE: this is NOT standard nn.LayerNorm (which uses biased variance and
    eps inside rsqrt); it matches the custom module in the spec.

    x: (N, C, ...) e.g. (N, C, H, W); gamma, beta: (C,)
    """
    N = x.shape[0]
    C = x.shape[1]
    F = 1
    for d in x.shape[1:]:
        F *= d
    assert F > 1, "unbiased std (N-1) requires at least 2 elements per sample"

    itemsize = jnp.dtype(x.dtype).itemsize
    F_pad = pl.cdiv(F, 128) * 128
    budget = _vmem_budget_bytes()
    rows = _select_rows(N, F_pad, itemsize, budget, affine)
    N_pad = pl.cdiv(N, rows) * rows
    grid = (N_pad // rows,)

    # Flatten and zero-pad (padded rows/cols are sliced off afterwards; zeros
    # keep the reductions exact and produce finite, discarded outputs).
    x_flat = x.reshape(N, F)
    if N_pad != N or F_pad != F:
        x_flat = jnp.pad(x_flat, ((0, N_pad - N), (0, F_pad - F)))

    out_shape = jax.ShapeDtypeStruct((N_pad, F_pad), x.dtype)
    x_spec = pl.BlockSpec((rows, F_pad), lambda i: (i, 0))
    out_spec = pl.BlockSpec((rows, F_pad), lambda i: (i, 0))

    if affine:
        # Expand per-channel gamma/beta once in the wrapper to a resident
        # (1, F_pad) f32 row (each channel value repeated over its spatial
        # extent), zero-padded in the lane dim.
        rep = F // C
        g_row = jnp.repeat(gamma.astype(jnp.float32), rep)
        b_row = jnp.repeat(beta.astype(jnp.float32), rep)
        if F_pad != F:
            g_row = jnp.pad(g_row, (0, F_pad - F))
            b_row = jnp.pad(b_row, (0, F_pad - F))
        g_row = g_row.reshape(1, F_pad)
        b_row = b_row.reshape(1, F_pad)
        kernel = functools.partial(_kernel_affine, eps=eps, n_feat=F,
                                   n_feat_pad=F_pad)
        in_specs = [
            x_spec,
            pl.BlockSpec((1, F_pad), lambda i: (0, 0)),
            pl.BlockSpec((1, F_pad), lambda i: (0, 0)),
        ]
        operands = (x_flat, g_row, b_row)
    else:
        kernel = functools.partial(_kernel_plain, eps=eps, n_feat=F,
                                   n_feat_pad=F_pad)
        in_specs = [x_spec]
        operands = (x_flat,)

    out_flat = pl.pallas_call(
        kernel,
        out_shape=out_shape,
        grid_spec=pltpu.PrefetchScalarGridSpec(
            num_scalar_prefetch=0,
            grid=grid,
            in_specs=in_specs,
            out_specs=out_spec,
        ),
        compiler_params=pltpu.CompilerParams(
            dimension_semantics=("parallel",),
            vmem_limit_bytes=budget,
        ),
    )(*operands)

    if N_pad != N or F_pad != F:
        out_flat = out_flat[:N, :F]
    return out_flat.reshape(x.shape)


def _reference(x, gamma, beta, eps=1e-5):
    N = x.shape[0]
    xf = x.reshape(N, -1).astype(jnp.float32)
    mean = xf.mean(axis=1)
    # unbiased std (N-1), matching torch.std default
    var = jnp.sum((xf - mean[:, None]) ** 2, axis=1) / (xf.shape[1] - 1)
    std = jnp.sqrt(var)
    shape = (N,) + (1,) * (x.ndim - 1)
    y = (x - mean.reshape(shape)) / (std.reshape(shape) + eps)
    gshape = (1, -1) + (1,) * (x.ndim - 2)
    return y * gamma.reshape(gshape) + beta.reshape(gshape)


if __name__ == "__main__":
    key = jax.random.PRNGKey(0)
    kx, kg = jax.random.split(key)

    N, C, H, W = 2, 4, 16, 16
    x = jax.random.normal(kx, (N, C, H, W), dtype=jnp.float32)
    # Deterministic parameter init mirroring nn.Parameter(Tensor(C).uniform_())
    gamma = jax.random.uniform(kg, (C,), dtype=jnp.float32)
    beta = jnp.zeros((C,), dtype=jnp.float32)

    out = layer_norm(x, gamma, beta, eps=1e-5, affine=True)
    out = jax.block_until_ready(out)

    ref = _reference(x, gamma, beta, eps=1e-5)
    assert out.shape == (N, C, H, W)
    assert jnp.allclose(out, ref, atol=1e-4, rtol=1e-4)

    print("KERNEL_OK")
</pallas_src>

<mosaic_0001>
module attributes {stable_mosaic.version = 11 : i64} {
  func.func @_kernel_affine(%arg0: i32, %arg1: memref<8x1024xf32, #tpu.memory_space<vmem>>, %arg2: memref<1x1024xf32, #tpu.memory_space<vmem>>, %arg3: memref<1x1024xf32, #tpu.memory_space<vmem>>, %arg4: memref<8x1024xf32, #tpu.memory_space<vmem>>) attributes {dimension_semantics = [#tpu.dimension_semantics<parallel>], iteration_bounds = array<i64: 1>, scalar_prefetch = 0 : i64, scratch_operands = 0 : i64, tpu.core_type = #tpu.core_type<tc>, window_params = [{transform_indices = @transform_0, window_bounds = array<i64: 8, 1024>}, {pipeline_mode = #tpu.pipeline_mode<synchronous>, transform_indices = @transform_1, window_bounds = array<i64: 1, 1024>}, {pipeline_mode = #tpu.pipeline_mode<synchronous>, transform_indices = @transform_2, window_bounds = array<i64: 1, 1024>}, {transform_indices = @transform_3, window_bounds = array<i64: 8, 1024>}]} {
    %c0 = arith.constant 0 : index
    %c0_0 = arith.constant 0 : index
    %0 = vector.load %arg1[%c0, %c0_0] : memref<8x1024xf32, #tpu.memory_space<vmem>>, vector<8x1024xf32>
    %cst = arith.constant dense<0.000000e+00> : vector<8xf32>
    %1 = vector.multi_reduction <add>, %0, %cst [1] : vector<8x1024xf32> to vector<8xf32>
    %2 = vector.shape_cast %1 : vector<8xf32> to vector<8x1xf32>
    %cst_1 = arith.constant 9.765625E-4 : f32
    %3 = vector.broadcast %cst_1 : f32 to vector<8x1xf32>
    %4 = arith.mulf %2, %3 : vector<8x1xf32>
    %5 = vector.broadcast %4 : vector<8x1xf32> to vector<8x1024xf32>
    %6 = arith.subf %0, %5 : vector<8x1024xf32>
    %7 = arith.mulf %6, %6 : vector<8x1024xf32>
    %cst_2 = arith.constant dense<0.000000e+00> : vector<8xf32>
    %8 = vector.multi_reduction <add>, %7, %cst_2 [1] : vector<8x1024xf32> to vector<8xf32>
    %9 = vector.shape_cast %8 : vector<8xf32> to vector<8x1xf32>
    %cst_3 = arith.constant 9.77517105E-4 : f32
    %10 = vector.broadcast %cst_3 : f32 to vector<8x1xf32>
    %11 = arith.mulf %9, %10 : vector<8x1xf32>
    %12 = math.sqrt %11 : vector<8x1xf32>
    %cst_4 = arith.constant 9.99999974E-6 : f32
    %13 = vector.broadcast %cst_4 : f32 to vector<8x1xf32>
    %14 = arith.addf %12, %13 : vector<8x1xf32>
    %15 = tpu.reciprocal %14 : vector<8x1xf32> -> vector<8x1xf32>
    %16 = vector.broadcast %15 : vector<8x1xf32> to vector<8x1024xf32>
    %17 = arith.mulf %6, %16 : vector<8x1024xf32>
    %c0_5 = arith.constant 0 : index
    %c0_6 = arith.constant 0 : index
    %18 = vector.load %arg2[%c0_5, %c0_6] : memref<1x1024xf32, #tpu.memory_space<vmem>>, vector<1x1024xf32>
    %19 = vector.broadcast %18 : vector<1x1024xf32> to vector<8x1024xf32>
    %20 = arith.mulf %17, %19 : vector<8x1024xf32>
    %c0_7 = arith.constant 0 : index
    %c0_8 = arith.constant 0 : index
    %21 = vector.load %arg3[%c0_7, %c0_8] : memref<1x1024xf32, #tpu.memory_space<vmem>>, vector<1x1024xf32>
    %22 = vector.broadcast %21 : vector<1x1024xf32> to vector<8x1024xf32>
    %23 = arith.addf %20, %22 : vector<8x1024xf32>
    %c0_9 = arith.constant 0 : index
    %c0_10 = arith.constant 0 : index
    %24 = vector.load %arg4[%c0_9, %c0_10] : memref<8x1024xf32, #tpu.memory_space<vmem>>, vector<8x1024xf32>
    tpu.vector_store %arg4[%c0_9, %c0_10], %23 {strides = array<i32>} : memref<8x1024xf32, #tpu.memory_space<vmem>>, vector<8x1024xf32>,
    return
  }
  func.func @transform_0(%arg0: i32) -> (i32, i32) {
    %c0_i32 = arith.constant 0 : i32
    %c0_i32_0 = arith.constant 0 : i32
    return %arg0, %c0_i32 : i32, i32
  }
  func.func @transform_1(%arg0: i32) -> (i32, i32) {
    %c0_i32 = arith.constant 0 : i32
    %c0_i32_0 = arith.constant 0 : i32
    %c0_i32_1 = arith.constant 0 : i32
    return %c0_i32, %c0_i32_0 : i32, i32
  }
  func.func @transform_2(%arg0: i32) -> (i32, i32) {
    %c0_i32 = arith.constant 0 : i32
    %c0_i32_0 = arith.constant 0 : i32
    %c0_i32_1 = arith.constant 0 : i32
    return %c0_i32, %c0_i32_0 : i32, i32
  }
  func.func @transform_3(%arg0: i32) -> (i32, i32) {
    %c0_i32 = arith.constant 0 : i32
    %c0_i32_0 = arith.constant 0 : i32
    return %arg0, %c0_i32 : i32, i32
  }
}

</mosaic_0001>

<llo_original>
// kernel: tpu_custom_call.1
$region0: #{tpu_custom_call.1}
  #allocation0 [shape = 'u32[]', space=smem, size = 0x4, offset = 0x4, fixed_abs, tag = 'smem constant byte address 0x4 - core index']
  #allocation1 [shape = 'u32[72,128]{1,0:T(1,128)}', space=vmem, size = 0x9000, scoped, tag = 'internal scratch']
  %s0 = inlined_call_operand.hbm [shape: f32[8,1024], index: 0, kind: input, shape index: {}]
  %s1 = inlined_call_operand.hbm [shape: f32[1,1024], index: 1, kind: input, shape index: {}]
  %s2 = inlined_call_operand.hbm [shape: f32[1,1024], index: 2, kind: input, shape index: {}]
  %s3 = inlined_call_operand.hbm [shape: f32[8,1024], index: 3, kind: output, shape index: {}]
  %s4 = sld [smem:[#allocation0]]
  $region34: #{tpu_custom_call.1} parent=0
    _
  %s6 = ssub.s32 1, %s4
  %s7 = scalar_select 0, %s6, %s4
  $region1: #{tpu_custom_call.1} parent=0
    #allocation2 [shape = 'u8[32768]{0}', space=vmem, size = 0x8000, scoped, tag = 'input window, operand 0, single buffered']
    #allocation3 [shape = 's32[1]{0}', space=sflag, size = 0x4, scoped, tag = 'scoped memory for tpu_custom_call.1']
    #allocation4 [shape = 's32[1]{0}', space=sflag, size = 0x4, scoped, tag = 'scoped memory for tpu_custom_call.1']
    #allocation5 [shape = 'u8[4096]{0}', space=vmem, size = 0x1000, scoped, tag = 'input window, operand 1, single buffered']
    #allocation6 [shape = 's32[1]{0}', space=sflag, size = 0x4, scoped, tag = 'scoped memory for tpu_custom_call.1']
    #allocation7 [shape = 'u8[4096]{0}', space=vmem, size = 0x1000, scoped, tag = 'input window, operand 2, single buffered']
    #allocation8 [shape = 'u8[32768]{0}', space=vmem, size = 0x8000, scoped, tag = 'output window, operand 0, single buffered']
    %8 = vsyncpa [#allocation3], 0
    %9 = vsyncpa [#allocation6], 0
    %10 = vsyncpa [#allocation4], 0
    // Predicated region
    $region2: #{tpu_custom_call.1} parent=1 // pred_check
      _
    $region3: #{tpu_custom_call.1} parent=1 // pred_check_branch
      %12 = sbr.rel (0) target = $region5
    $region4: #{tpu_custom_call.1} parent=1 // pred_region
      %14 = vsyncadd [#allocation3], 0
      %s16 = sshll.u32 %s0, 4
      %s17 = int_to_ptr.hbm [resolvable:$true] %s16
      %s18 = sshll.u32 [#allocation2], 4
      %s19 = int_to_ptr.vmem [resolvable:$true] %s18
      %21 = dma.hbm_to_vmem [thread:$0]  %s17, 1024, %s19, [#allocation3]
    $region5: #{tpu_custom_call.1} parent=1 // pred_fallthru
      _
    // Predicated region
    $region6: #{tpu_custom_call.1} parent=1 // pred_check
      _
    $region7: #{tpu_custom_call.1} parent=1 // pred_check_branch
      %23 = sbr.rel (0) target = $region9
    $region8: #{tpu_custom_call.1} parent=1 // pred_region
      %25 = vsyncadd [#allocation6], 0
      %s27 = sshll.u32 %s1, 4
      %s28 = int_to_ptr.hbm [resolvable:$true] %s27
      %s29 = sshll.u32 [#allocation5], 4
      %s30 = int_to_ptr.vmem [resolvable:$true] %s29
      %32 = dma.hbm_to_vmem [thread:$0]  %s28, 128, %s30, [#allocation6]
    $region9: #{tpu_custom_call.1} parent=1 // pred_fallthru
      _
    // Predicated region
    $region10: #{tpu_custom_call.1} parent=1 // pred_check
      _
    $region11: #{tpu_custom_call.1} parent=1 // pred_check_branch
      %34 = sbr.rel (0) target = $region13
    $region12: #{tpu_custom_call.1} parent=1 // pred_region
      %36 = vsyncadd [#allocation6], 0
      %s38 = sshll.u32 %s2, 4
      %s39 = int_to_ptr.hbm [resolvable:$true] %s38
      %s40 = sshll.u32 [#allocation7], 4
      %s41 = int_to_ptr.vmem [resolvable:$true] %s40
      %43 = dma.hbm_to_vmem [thread:$0]  %s39, 128, %s41, [#allocation6]
    $region13: #{tpu_custom_call.1} parent=1 // pred_fallthru
      _
    // Predicated region
    $region14: #{tpu_custom_call.1} parent=1 // pred_check
      _
    $region15: #{tpu_custom_call.1} parent=1 // pred_check_branch
      %45 = sbr.rel (0) target = $region17
    $region16: #{tpu_custom_call.1} parent=1 // pred_region
      %47 = dma.done [#allocation3], 1024
    $region17: #{tpu_custom_call.1} parent=1 // pred_fallthru
      _
    // Predicated region
    $region18: #{tpu_custom_call.1} parent=1 // pred_check
      _
    $region19: #{tpu_custom_call.1} parent=1 // pred_check_branch
      %49 = sbr.rel (0) target = $region21
    $region20: #{tpu_custom_call.1} parent=1 // pred_region
      %51 = dma.done [#allocation6], 128
    $region21: #{tpu_custom_call.1} parent=1 // pred_fallthru
      _
    // Predicated region
    $region22: #{tpu_custom_call.1} parent=1 // pred_check
      _
    $region23: #{tpu_custom_call.1} parent=1 // pred_check_branch
      %53 = sbr.rel (0) target = $region25
    $region24: #{tpu_custom_call.1} parent=1 // pred_region
      %55 = dma.done [#allocation6], 128
    $region25: #{tpu_custom_call.1} parent=1 // pred_fallthru
      _
    %v56 = vld [vmem:[#allocation2] sm:$0xff]
    %v57 = vld [vmem:[#allocation2 + $0x8] sm:$0xff]
    %v58 = vld [vmem:[#allocation2 + $0x10] sm:$0xff]
    %v59 = vld [vmem:[#allocation2 + $0x18] sm:$0xff]
    %v60 = vld [vmem:[#allocation2 + $0x20] sm:$0xff]
    %v61 = vld [vmem:[#allocation2 + $0x28] sm:$0xff]
    %v62 = vld [vmem:[#allocation2 + $0x30] sm:$0xff]
    %v63 = vld [vmem:[#allocation2 + $0x38] sm:$0xff]
    %v64 = vadd.f32 %v56, %v57
    %v65 = vadd.f32 %v64, %v58
    %v66 = vadd.f32 %v65, %v59
    %v67 = vadd.f32 %v66, %v60
    %v68 = vadd.f32 %v67, %v61
    %v69 = vadd.f32 %v68, %v62
    %v70 = vadd.f32 %v69, %v63
    %71 = vadd.xlane.f32.xlu0 %v70
    %v72 = vpop.xlane.xlu0 %71
    %v73 = vmul.f32 %v72, 0.0009765625
    %v74 = vsub.f32 %v56, %v73
    %v75 = vsub.f32 %v57, %v73
    %v76 = vsub.f32 %v58, %v73
    %v77 = vsub.f32 %v59, %v73
    %v78 = vsub.f32 %v60, %v73
    %v79 = vsub.f32 %v61, %v73
    %v80 = vsub.f32 %v62, %v73
    %v81 = vsub.f32 %v63, %v73
    %v82 = vmul.f32 %v74, %v74
    %v83 = vmul.f32 %v75, %v75
    %v84 = vmul.f32 %v76, %v76
    %v85 = vmul.f32 %v77, %v77
    %v86 = vmul.f32 %v78, %v78
    %v87 = vmul.f32 %v79, %v79
    %v88 = vmul.f32 %v80, %v80
    %v89 = vmul.f32 %v81, %v81
    %v90 = vadd.f32 %v82, %v83
    %v91 = vadd.f32 %v90, %v84
    %v92 = vadd.f32 %v91, %v85
    %v93 = vadd.f32 %v92, %v86
    %v94 = vadd.f32 %v93, %v87
    %v95 = vadd.f32 %v94, %v88
    %v96 = vadd.f32 %v95, %v89
    %97 = vadd.xlane.f32.xlu0 %v96
    %v98 = vpop.xlane.xlu0 %97
    %v99 = vmul.f32 %v98, 0.0009775171
    %v100 = vrsqrt.pop %v99
    %v101 = vmul.f32 %v100, %v99
    %v102 = vmul.f32 %v101, %v100
    %v103 = vmul.f32 0.5, %v102
    %v104 = vsub.f32 1.5, %v103
    %v105 = vmul.f32 %v100, %v104
    %v106 = vmul.f32 %v99, %v105
    %vm107 = vcmp.eq.f32.partialorder %v99, inf
    %v108 = vsel %vm107, %v99, %v106
    %vm109 = vcmp.eq.f32.partialorder %v99, 0.0
    %v110 = vand.u32 %v99, 2147483648
    %v111 = vsel %vm109, %v110, %v108
    %v112 = vadd.f32 %v111, 1e-05
    %v113 = vrcp.pop %v112
    %v114 = vmul.f32 %v112, %v113
    %v115 = vsub.f32 1.0, %v114
    %v116 = vmul.f32 %v113, %v115
    %v117 = vadd.f32 %v113, %v116
    %vm118 = vweird.f32 %v112
    %vm119 = vweird.f32 %v113
    %vm120 = vmor %vm118, %vm119
    %v121 = vsel %vm120, %v113, %v117
    %v122 = vand.u32 2147483647, %v112
    %vm123 = vcmp.eq.f32.partialorder %v122, 8.507059e+37
    %v124 = vand.u32 %v112, 2147483648
    %v125 = vor.u32 1.1754944e-38, %v124
    %v126 = vsel %vm123, %v125, %v121
    %v127 = vmul.f32 %v74, %v126
    %v128 = vmul.f32 %v75, %v126
    %v129 = vmul.f32 %v76, %v126
    %v130 = vmul.f32 %v77, %v126
    %v131 = vmul.f32 %v78, %v126
    %v132 = vmul.f32 %v79, %v126
    %v133 = vmul.f32 %v80, %v126
    %v134 = vmul.f32 %v81, %v126
    %v135 = vld [vmem:[#allocation5] sm:$0xff]
    %v137 = vperm.slane %v135, 0
    %v138 = vperm.slane %v135, 1
    %v139 = vperm.slane %v135, 2
    %v140 = vperm.slane %v135, 3
    %v141 = vperm.slane %v135, 4
    %v142 = vperm.slane %v135, 5
    %v143 = vperm.slane %v135, 6
    %v144 = vperm.slane %v135, 7
    %v153 = vmul.f32 %v127, %v137
    %v154 = vmul.f32 %v128, %v138
    %v155 = vmul.f32 %v129, %v139
    %v156 = vmul.f32 %v130, %v140
    %v157 = vmul.f32 %v131, %v141
    %v158 = vmul.f32 %v132, %v142
    %v159 = vmul.f32 %v133, %v143
    %v160 = vmul.f32 %v134, %v144
    %v161 = vld [vmem:[#allocation7] sm:$0xff]
    %v163 = vperm.slane %v161, 0
    %v164 = vperm.slane %v161, 1
    %v165 = vperm.slane %v161, 2
    %v166 = vperm.slane %v161, 3
    %v167 = vperm.slane %v161, 4
    %v168 = vperm.slane %v161, 5
    %v169 = vperm.slane %v161, 6
    %v170 = vperm.slane %v161, 7
    %v179 = vadd.f32 %v153, %v163
    %v180 = vadd.f32 %v154, %v164
    %v181 = vadd.f32 %v155, %v165
    %v182 = vadd.f32 %v156, %v166
    %v183 = vadd.f32 %v157, %v167
    %v184 = vadd.f32 %v158, %v168
    %v185 = vadd.f32 %v159, %v169
    %v186 = vadd.f32 %v160, %v170
    %187 = vst [vmem:[#allocation8] sm:$0xff] %v179
    %188 = vst [vmem:[#allocation8 + $0x8] sm:$0xff] %v180
    %189 = vst [vmem:[#allocation8 + $0x10] sm:$0xff] %v181
    %190 = vst [vmem:[#allocation8 + $0x18] sm:$0xff] %v182
    %191 = vst [vmem:[#allocation8 + $0x20] sm:$0xff] %v183
    %192 = vst [vmem:[#allocation8 + $0x28] sm:$0xff] %v184
    %193 = vst [vmem:[#allocation8 + $0x30] sm:$0xff] %v185
    %194 = vst [vmem:[#allocation8 + $0x38] sm:$0xff] %v186
    // Predicated region
    $region26: #{tpu_custom_call.1} parent=1 // pred_check
      _
    $region27: #{tpu_custom_call.1} parent=1 // pred_check_branch
      %196 = sbr.rel (0) target = $region29
    $region28: #{tpu_custom_call.1} parent=1 // pred_region
      %198 = vsyncadd [#allocation4], 0
      %s200 = sshll.u32 [#allocation8], 4
      %s201 = int_to_ptr.vmem [resolvable:$true] %s200
      %s202 = sshll.u32 %s3, 4
      %s203 = int_to_ptr.hbm [resolvable:$true] %s202
      %205 = dma.vmem_to_hbm [thread:$0]  %s201, 1024, %s203, [#allocation4]
    $region29: #{tpu_custom_call.1} parent=1 // pred_fallthru
      _
    // Predicated region
    $region30: #{tpu_custom_call.1} parent=1 // pred_check
      _
    $region31: #{tpu_custom_call.1} parent=1 // pred_check_branch
      %207 = sbr.rel (0) target = $region33
    $region32: #{tpu_custom_call.1} parent=1 // pred_region
      %209 = dma.done [#allocation4], 1024
    $region33: #{tpu_custom_call.1} parent=1 // pred_fallthru
      _
    %210 = vsyncpa [#allocation3], 1
    %211 = vsyncpa [#allocation6], 1
    %212 = vsyncpa [#allocation4], 1

</llo_original>
